<compile_context>
chip_gen: v7x
topology: tpu7x:2x2x1
jax: 0.10.0
libtpu: 0.0.40
codegen_flags: <defaults>
</compile_context>

<pallas_src>
import jax
import jax.numpy as jnp
from jax.experimental import pallas as pl
from jax.experimental.pallas import tpu as pltpu


# ---------------------------------------------------------------------------
# Kernel
# ---------------------------------------------------------------------------
def doubleq_kernel(sa_ref, w1_ref, b1_ref, w2_ref, b2_ref, w3_ref, b3_ref,
                   out_ref):
    """Evaluates BOTH Q-networks for one batch tile in a single body."""
    H = w2_ref.shape[1]                       # per-net hidden size (static)

    x = sa_ref[...]                                                    # (Bt, D)

    # Layer 1: the two nets' first layers are concatenated along the output
    # axis -> one wide MXU matmul. Accumulate + bias + ReLU in f32.
    h1 = jnp.dot(x, w1_ref[...], preferred_element_type=jnp.float32) + b1_ref[...]
    h1 = jnp.maximum(h1, 0.0)                                          # (Bt, 2H) f32
    h1 = h1.astype(w2_ref.dtype)

    # Layer 2: contract each net's (H, H) block separately — no zero-padded
    # block-diagonal, so no wasted FLOPs / weight bytes.
    h2a = jnp.dot(h1[:, :H], w2_ref[0], preferred_element_type=jnp.float32)
    h2b = jnp.dot(h1[:, H:], w2_ref[1], preferred_element_type=jnp.float32)
    h2 = jnp.concatenate([h2a, h2b], axis=-1) + b2_ref[...]            # (Bt, 2H) f32
    h2 = jnp.maximum(h2, 0.0)
    h2 = h2.astype(w3_ref.dtype)

    # Layer 3: (Bt, H) @ (H, 1) per net; outputs packed side by side on lanes.
    q1 = jnp.dot(h2[:, :H], w3_ref[0], preferred_element_type=jnp.float32)
    q2 = jnp.dot(h2[:, H:], w3_ref[1], preferred_element_type=jnp.float32)
    out_ref[...] = jnp.concatenate([q1, q2], axis=-1) + b3_ref[...]    # (Bt, 2)


# ---------------------------------------------------------------------------
# Packing / tiling helpers
# ---------------------------------------------------------------------------
def pack_double_q_params(params, weight_dtype=jnp.float32):
    """Pack two independent MLP critics into fused per-layer operands.

    Layer 1 concatenates the two nets along the output axis (one wide matmul);
    layers 2/3 stay stacked on a leading axis of size 2 and are contracted
    per-net inside the kernel (no zero padding).  Biases stay f32 (they are
    added to the f32 accumulator).
    """
    w1, b1, w2, b2, w3, b3 = params           # each stacked on leading axis=2

    w1p = jnp.concatenate([w1[0], w1[1]], axis=-1).astype(weight_dtype)  # (D, 2H)
    b1p = jnp.concatenate([b1[0], b1[1]], axis=-1).astype(jnp.float32)   # (1, 2H)
    w2p = w2.astype(weight_dtype)                                        # (2, H, H)
    b2p = jnp.concatenate([b2[0], b2[1]], axis=-1).astype(jnp.float32)   # (1, 2H)
    w3p = w3.astype(weight_dtype)                                        # (2, H, 1)
    b3p = jnp.concatenate([b3[0], b3[1]], axis=-1).astype(jnp.float32)   # (1, 2)

    return w1p, b1p, w2p, b2p, w3p, b3p


def _round_up(x, m):
    return ((x + m - 1) // m) * m


def _choose_block_b(B):
    """Batch tile size.

    - small B: single grid step (per-step overhead dominates),
    - 256 < B <= 1024: two tiles so both v7x TensorCores get work,
    - large B: 512-row tiles (>= 2 parallel steps, ~85% of HBM roofline).
    """
    if B <= 256:
        return _round_up(B, 8)
    if B <= 1024:
        return _round_up(pl.cdiv(B, 2), 8)
    return 512


def _vmem_limit_bytes(block_b, D, H, w_itemsize, x_itemsize):
    """Explicit VMEM budget (important on v7x's 64 MiB VMEM)."""
    two_h = 2 * H
    w_bytes = (D * two_h + 2 * H * H + 2 * H) * w_itemsize
    b_bytes = (two_h + two_h + 2) * 4
    io_bytes = 2 * block_b * D * x_itemsize + 2 * block_b * 2 * 4   # dbl-buffered tiles
    act_bytes = 4 * block_b * two_h * 4                             # f32 activations + slack
    need = 2 * (w_bytes + b_bytes) + io_bytes + act_bytes           # worst case: weights x2
    return int(min(max(2 * need, 32 * 1024 * 1024), 60 * 1024 * 1024))


# ---------------------------------------------------------------------------
# Forward wrapper
# ---------------------------------------------------------------------------
def double_q_forward(sa, params, *, weight_dtype=jnp.bfloat16):
    """Runs both Q-networks in one fused kernel; returns (q1, q2), each (B, 1)."""
    w1p, b1p, w2p, b2p, w3p, b3p = pack_double_q_params(params, weight_dtype)
    B, D = sa.shape
    H = w2p.shape[1]
    two_h = 2 * H

    # Robust cdiv-based batch tiling with wrapper-side zero padding.
    block_b = _choose_block_b(B)
    nb = pl.cdiv(B, block_b)
    B_pad = nb * block_b

    x = sa.astype(weight_dtype)           # MXU-native operand width (no-op for f32)
    if B_pad != B:
        x = jnp.pad(x, ((0, B_pad - B), (0, 0)))

    flops = 2 * B_pad * (D * two_h + 2 * H * H + 2 * H)
    bytes_accessed = (x.size * x.dtype.itemsize
                      + sum(int(a.size) * a.dtype.itemsize
                            for a in (w1p, b1p, w2p, b2p, w3p, b3p))
                      + B_pad * 2 * 4)
    vmem_limit = _vmem_limit_bytes(block_b, D, H,
                                   w1p.dtype.itemsize, x.dtype.itemsize)

    weight_shapes = [w1p.shape, b1p.shape, w2p.shape, b2p.shape,
                     w3p.shape, b3p.shape]

    def build(single_buffer_weights):
        def w_spec(shape):
            zeros = (0,) * len(shape)
            if single_buffer_weights:
                # Weights are grid-constant -> don't double-buffer them.
                return pl.BlockSpec(shape, lambda i, _z=zeros: _z,
                                    pipeline_mode=pl.Buffered(1))
            return pl.BlockSpec(shape, lambda i, _z=zeros: _z)

        return pl.pallas_call(
            doubleq_kernel,
            out_shape=jax.ShapeDtypeStruct((B_pad, 2), jnp.float32),
            grid=(nb,),
            in_specs=[pl.BlockSpec((block_b, D), lambda i: (i, 0))]   # sa batch tile
                     + [w_spec(s) for s in weight_shapes],
            out_specs=pl.BlockSpec((block_b, 2), lambda i: (i, 0)),
            compiler_params=pltpu.CompilerParams(
                dimension_semantics=("parallel",),    # batch tiles are independent
                vmem_limit_bytes=vmem_limit),
            cost_estimate=pl.CostEstimate(flops=flops, transcendentals=0,
                                          bytes_accessed=bytes_accessed),
        )

    args = (x, w1p, b1p, w2p, b2p, w3p, b3p)
    try:
        out = build(True)(*args)
    except Exception:
        # Older JAX without BlockSpec(pipeline_mode=...) support: default buffering.
        out = build(False)(*args)

    out = out[:B]                                   # drop padded rows (contiguous slice)
    q1, q2 = jnp.split(out, 2, axis=-1)             # single split, no strided copies
    return q1, q2


# ---------------------------------------------------------------------------
# Reference + init (pure JAX)
# ---------------------------------------------------------------------------
def init_double_q_params(key, in_dim, hidden):
    """Deterministic init of two independent MLP critics, stacked on axis 0."""
    def linear(k, fan_in, fan_out):
        bound = 1.0 / jnp.sqrt(jnp.float32(fan_in))
        kw, kb = jax.random.split(k)
        w = jax.random.uniform(kw, (fan_in, fan_out), jnp.float32, -bound, bound)
        b = jax.random.uniform(kb, (1, fan_out), jnp.float32, -bound, bound)
        return w, b

    keys = jax.random.split(key, 6)
    w1a, b1a = linear(keys[0], in_dim, hidden)
    w2a, b2a = linear(keys[1], hidden, hidden)
    w3a, b3a = linear(keys[2], hidden, 1)
    w1b, b1b = linear(keys[3], in_dim, hidden)
    w2b, b2b = linear(keys[4], hidden, hidden)
    w3b, b3b = linear(keys[5], hidden, 1)

    stack = lambda a, b: jnp.stack([a, b], axis=0)
    return (stack(w1a, w1b), stack(b1a, b1b),
            stack(w2a, w2b), stack(b2a, b2b),
            stack(w3a, w3b), stack(b3a, b3b))


def double_q_reference(sa, params, weight_dtype=jnp.float32):
    """Pure-JAX reference on the UNPACKED per-net weights (same dtype recipe)."""
    w1, b1, w2, b2, w3, b3 = params

    def one(n):
        x = sa.astype(weight_dtype)
        h1 = jnp.dot(x, w1[n].astype(weight_dtype),
                     preferred_element_type=jnp.float32) + b1[n]
        h1 = jnp.maximum(h1, 0.0).astype(weight_dtype)
        h2 = jnp.dot(h1, w2[n].astype(weight_dtype),
                     preferred_element_type=jnp.float32) + b2[n]
        h2 = jnp.maximum(h2, 0.0).astype(weight_dtype)
        return jnp.dot(h2, w3[n].astype(weight_dtype),
                       preferred_element_type=jnp.float32) + b3[n]

    return one(0), one(1)


# ---------------------------------------------------------------------------
# Test
# ---------------------------------------------------------------------------
if __name__ == "__main__":
    key = jax.random.PRNGKey(0)
    k_sa, k_params = jax.random.split(key)

    batch, state_dim, action_dim, hidden = 8, 24, 8, 32
    in_dim = state_dim + action_dim          # sa = concat(state, action)

    sa = jax.random.normal(k_sa, (batch, in_dim), dtype=jnp.float32)
    params = init_double_q_params(k_params, in_dim, hidden)

    # 1) f32 weights: exact check against the per-net reference.
    q1, q2 = double_q_forward(sa, params, weight_dtype=jnp.float32)
    q1 = jax.block_until_ready(q1)
    q2 = jax.block_until_ready(q2)
    r1, r2 = double_q_reference(sa, params, weight_dtype=jnp.float32)
    assert q1.shape == (batch, 1) and q2.shape == (batch, 1)
    assert jnp.allclose(q1, r1, atol=1e-5, rtol=1e-5)
    assert jnp.allclose(q2, r2, atol=1e-5, rtol=1e-5)

    # 2) bf16 weights/activations (production setting), f32 accumulation.
    q1b, q2b = double_q_forward(sa, params, weight_dtype=jnp.bfloat16)
    q1b = jax.block_until_ready(q1b)
    q2b = jax.block_until_ready(q2b)
    r1b, r2b = double_q_reference(sa, params, weight_dtype=jnp.bfloat16)
    assert jnp.allclose(q1b, r1b, atol=1e-2, rtol=1e-2)
    assert jnp.allclose(q2b, r2b, atol=1e-2, rtol=1e-2)

    # 3) Batch sizes that exercise the padded / multi-tile grid paths
    #    (B=100 -> one padded 104-row tile; B=384 -> two 192-row parallel tiles).
    for bsz in (100, 384):
        sab = jax.random.normal(jax.random.PRNGKey(bsz), (bsz, in_dim),
                                dtype=jnp.float32)
        p1, p2 = double_q_forward(sab, params, weight_dtype=jnp.float32)
        p1 = jax.block_until_ready(p1)
        p2 = jax.block_until_ready(p2)
        ref1, ref2 = double_q_reference(sab, params, weight_dtype=jnp.float32)
        assert p1.shape == (bsz, 1) and p2.shape == (bsz, 1)
        assert jnp.allclose(p1, ref1, atol=1e-5, rtol=1e-5)
        assert jnp.allclose(p2, ref2, atol=1e-5, rtol=1e-5)

    print("KERNEL_OK")
</pallas_src>

<mosaic_0001>
module attributes {stable_mosaic.version = 11 : i64} {
  func.func @doubleq_kernel(%arg0: i32, %arg1: memref<8x32xf32, #tpu.memory_space<vmem>>, %arg2: memref<32x64xf32, #tpu.memory_space<vmem>>, %arg3: memref<1x64xf32, #tpu.memory_space<vmem>>, %arg4: memref<2x32x32xf32, #tpu.memory_space<vmem>>, %arg5: memref<1x64xf32, #tpu.memory_space<vmem>>, %arg6: memref<2x32x1xf32, #tpu.memory_space<vmem>>, %arg7: memref<1x2xf32, #tpu.memory_space<vmem>>, %arg8: memref<8x2xf32, #tpu.memory_space<vmem>>) attributes {dimension_semantics = [#tpu.dimension_semantics<parallel>], iteration_bounds = array<i64: 1>, scalar_prefetch = 0 : i64, scratch_operands = 0 : i64, tpu.core_type = #tpu.core_type<tc>, window_params = [{transform_indices = @transform_0, window_bounds = array<i64: 8, 32>}, {pipeline_mode = #tpu.pipeline_mode<synchronous>, transform_indices = @transform_1, window_bounds = array<i64: 32, 64>}, {pipeline_mode = #tpu.pipeline_mode<synchronous>, transform_indices = @transform_2, window_bounds = array<i64: 1, 64>}, {pipeline_mode = #tpu.pipeline_mode<synchronous>, transform_indices = @transform_3, window_bounds = array<i64: 2, 32, 32>}, {pipeline_mode = #tpu.pipeline_mode<synchronous>, transform_indices = @transform_4, window_bounds = array<i64: 1, 64>}, {pipeline_mode = #tpu.pipeline_mode<synchronous>, transform_indices = @transform_5, window_bounds = array<i64: 2, 32, 1>}, {pipeline_mode = #tpu.pipeline_mode<synchronous>, transform_indices = @transform_6, window_bounds = array<i64: 1, 2>}, {transform_indices = @transform_7, window_bounds = array<i64: 8, 2>}]} {
    %c0 = arith.constant 0 : index
    %c0_0 = arith.constant 0 : index
    %0 = vector.load %arg1[%c0, %c0_0] : memref<8x32xf32, #tpu.memory_space<vmem>>, vector<8x32xf32>
    %c0_1 = arith.constant 0 : index
    %c0_2 = arith.constant 0 : index
    %1 = vector.load %arg2[%c0_1, %c0_2] : memref<32x64xf32, #tpu.memory_space<vmem>>, vector<32x64xf32>
    %cst = arith.constant dense<0.000000e+00> : vector<8x64xf32>
    %2 = tpu.matmul %0, %1, %cst {dimension_numbers = #tpu.dot_dimension_numbers<[1], [0], [0], [1], [0, 0, 1, 1], [], []>} : vector<8x32xf32>, vector<32x64xf32>, vector<8x64xf32> -> vector<8x64xf32>
    %c0_3 = arith.constant 0 : index
    %c0_4 = arith.constant 0 : index
    %3 = vector.load %arg3[%c0_3, %c0_4] : memref<1x64xf32, #tpu.memory_space<vmem>>, vector<1x64xf32>
    %4 = vector.broadcast %3 : vector<1x64xf32> to vector<8x64xf32>
    %5 = arith.addf %2, %4 : vector<8x64xf32>
    %cst_5 = arith.constant 0.000000e+00 : f32
    %6 = vector.broadcast %cst_5 : f32 to vector<8x64xf32>
    %7 = arith.maximumf %5, %6 : vector<8x64xf32>
    %8 = vector.extract_strided_slice %7 {offsets = [0, 0], sizes = [8, 32], strides = [1, 1]} : vector<8x64xf32> to vector<8x32xf32>
    %c0_6 = arith.constant 0 : index
    %c0_7 = arith.constant 0 : index
    %c0_8 = arith.constant 0 : index
    %9 = vector.load %arg4[%c0_6, %c0_7, %c0_8] : memref<2x32x32xf32, #tpu.memory_space<vmem>>, vector<1x32x32xf32>
    %10 = vector.shape_cast %9 : vector<1x32x32xf32> to vector<32x32xf32>
    %cst_9 = arith.constant dense<0.000000e+00> : vector<8x32xf32>
    %11 = tpu.matmul %8, %10, %cst_9 {dimension_numbers = #tpu.dot_dimension_numbers<[1], [0], [0], [1], [0, 0, 1, 1], [], []>} : vector<8x32xf32>, vector<32x32xf32>, vector<8x32xf32> -> vector<8x32xf32>
    %12 = vector.extract_strided_slice %7 {offsets = [0, 32], sizes = [8, 32], strides = [1, 1]} : vector<8x64xf32> to vector<8x32xf32>
    %c1 = arith.constant 1 : index
    %c0_10 = arith.constant 0 : index
    %c0_11 = arith.constant 0 : index
    %13 = vector.load %arg4[%c1, %c0_10, %c0_11] : memref<2x32x32xf32, #tpu.memory_space<vmem>>, vector<1x32x32xf32>
    %14 = vector.shape_cast %13 : vector<1x32x32xf32> to vector<32x32xf32>
    %cst_12 = arith.constant dense<0.000000e+00> : vector<8x32xf32>
    %15 = tpu.matmul %12, %14, %cst_12 {dimension_numbers = #tpu.dot_dimension_numbers<[1], [0], [0], [1], [0, 0, 1, 1], [], []>} : vector<8x32xf32>, vector<32x32xf32>, vector<8x32xf32> -> vector<8x32xf32>
    %16 = tpu.concatenate %11, %15 in 1 : vector<8x32xf32>, vector<8x32xf32> -> vector<8x64xf32>
    %c0_13 = arith.constant 0 : index
    %c0_14 = arith.constant 0 : index
    %17 = vector.load %arg5[%c0_13, %c0_14] : memref<1x64xf32, #tpu.memory_space<vmem>>, vector<1x64xf32>
    %18 = vector.broadcast %17 : vector<1x64xf32> to vector<8x64xf32>
    %19 = arith.addf %16, %18 : vector<8x64xf32>
    %cst_15 = arith.constant 0.000000e+00 : f32
    %20 = vector.broadcast %cst_15 : f32 to vector<8x64xf32>
    %21 = arith.maximumf %19, %20 : vector<8x64xf32>
    %22 = vector.extract_strided_slice %21 {offsets = [0, 0], sizes = [8, 32], strides = [1, 1]} : vector<8x64xf32> to vector<8x32xf32>
    %c0_16 = arith.constant 0 : index
    %c0_17 = arith.constant 0 : index
    %c0_18 = arith.constant 0 : index
    %23 = vector.load %arg6[%c0_16, %c0_17, %c0_18] : memref<2x32x1xf32, #tpu.memory_space<vmem>>, vector<1x32x1xf32>
    %24 = vector.shape_cast %23 : vector<1x32x1xf32> to vector<32x1xf32>
    %cst_19 = arith.constant dense<0.000000e+00> : vector<8x1xf32>
    %25 = tpu.matmul %22, %24, %cst_19 {dimension_numbers = #tpu.dot_dimension_numbers<[1], [0], [0], [1], [0, 0, 1, 1], [], []>} : vector<8x32xf32>, vector<32x1xf32>, vector<8x1xf32> -> vector<8x1xf32>
    %26 = vector.extract_strided_slice %21 {offsets = [0, 32], sizes = [8, 32], strides = [1, 1]} : vector<8x64xf32> to vector<8x32xf32>
    %c1_20 = arith.constant 1 : index
    %c0_21 = arith.constant 0 : index
    %c0_22 = arith.constant 0 : index
    %27 = vector.load %arg6[%c1_20, %c0_21, %c0_22] : memref<2x32x1xf32, #tpu.memory_space<vmem>>, vector<1x32x1xf32>
    %28 = vector.shape_cast %27 : vector<1x32x1xf32> to vector<32x1xf32>
    %cst_23 = arith.constant dense<0.000000e+00> : vector<8x1xf32>
    %29 = tpu.matmul %26, %28, %cst_23 {dimension_numbers = #tpu.dot_dimension_numbers<[1], [0], [0], [1], [0, 0, 1, 1], [], []>} : vector<8x32xf32>, vector<32x1xf32>, vector<8x1xf32> -> vector<8x1xf32>
    %30 = tpu.concatenate %25, %29 in 1 : vector<8x1xf32>, vector<8x1xf32> -> vector<8x2xf32>
    %c0_24 = arith.constant 0 : index
    %c0_25 = arith.constant 0 : index
    %31 = vector.load %arg7[%c0_24, %c0_25] : memref<1x2xf32, #tpu.memory_space<vmem>>, vector<1x2xf32>
    %32 = vector.broadcast %31 : vector<1x2xf32> to vector<8x2xf32>
    %33 = arith.addf %30, %32 : vector<8x2xf32>
    %c0_26 = arith.constant 0 : index
    %c0_27 = arith.constant 0 : index
    %34 = vector.load %arg8[%c0_26, %c0_27] : memref<8x2xf32, #tpu.memory_space<vmem>>, vector<8x2xf32>
    tpu.vector_store %arg8[%c0_26, %c0_27], %33 {strides = array<i32>} : memref<8x2xf32, #tpu.memory_space<vmem>>, vector<8x2xf32>,
    return
  }
  func.func @transform_0(%arg0: i32) -> (i32, i32) {
    %c0_i32 = arith.constant 0 : i32
    %c0_i32_0 = arith.constant 0 : i32
    return %arg0, %c0_i32 : i32, i32
  }
  func.func @transform_1(%arg0: i32) -> (i32, i32) {
    %c0_i32 = arith.constant 0 : i32
    %c0_i32_0 = arith.constant 0 : i32
    %c0_i32_1 = arith.constant 0 : i32
    return %c0_i32, %c0_i32_0 : i32, i32
  }
  func.func @transform_2(%arg0: i32) -> (i32, i32) {
    %c0_i32 = arith.constant 0 : i32
    %c0_i32_0 = arith.constant 0 : i32
    %c0_i32_1 = arith.constant 0 : i32
    return %c0_i32, %c0_i32_0 : i32, i32
  }
  func.func @transform_3(%arg0: i32) -> (i32, i32, i32) {
    %c0_i32 = arith.constant 0 : i32
    %c0_i32_0 = arith.constant 0 : i32
    %c0_i32_1 = arith.constant 0 : i32
    %c0_i32_2 = arith.constant 0 : i32
    return %c0_i32, %c0_i32_0, %c0_i32_1 : i32, i32, i32
  }
  func.func @transform_4(%arg0: i32) -> (i32, i32) {
    %c0_i32 = arith.constant 0 : i32
    %c0_i32_0 = arith.constant 0 : i32
    %c0_i32_1 = arith.constant 0 : i32
    return %c0_i32, %c0_i32_0 : i32, i32
  }
  func.func @transform_5(%arg0: i32) -> (i32, i32, i32) {
    %c0_i32 = arith.constant 0 : i32
    %c0_i32_0 = arith.constant 0 : i32
    %c0_i32_1 = arith.constant 0 : i32
    %c0_i32_2 = arith.constant 0 : i32
    return %c0_i32, %c0_i32_0, %c0_i32_1 : i32, i32, i32
  }
  func.func @transform_6(%arg0: i32) -> (i32, i32) {
    %c0_i32 = arith.constant 0 : i32
    %c0_i32_0 = arith.constant 0 : i32
    %c0_i32_1 = arith.constant 0 : i32
    return %c0_i32, %c0_i32_0 : i32, i32
  }
  func.func @transform_7(%arg0: i32) -> (i32, i32) {
    %c0_i32 = arith.constant 0 : i32
    %c0_i32_0 = arith.constant 0 : i32
    return %arg0, %c0_i32 : i32, i32
  }
}

module attributes {stable_mosaic.version = 11 : i64} {
  func.func @doubleq_kernel(%arg0: i32, %arg1: memref<8x32xf32, #tpu.memory_space<vmem>>, %arg2: memref<32x64xf32, #tpu.memory_space<vmem>>, %arg3: memref<1x64xf32, #tpu.memory_space<vmem>>, %arg4: memref<2x32x32xf32, #tpu.memory_space<vmem>>, %arg5: memref<1x64xf32, #tpu.memory_space<vmem>>, %arg6: memref<2x32x1xf32, #tpu.memory_space<vmem>>, %arg7: memref<1x2xf32, #tpu.memory_space<vmem>>, %arg8: memref<8x2xf32, #tpu.memory_space<vmem>>) attributes {dimension_semantics = [#tpu.dimension_semantics<parallel>], iteration_bounds = array<i64: 1>, scalar_prefetch = 0 : i64, scratch_operands = 0 : i64, tpu.core_type = #tpu.core_type<tc>, window_params = [{transform_indices = @transform_0, window_bounds = array<i64: 8, 32>}, {pipeline_mode = #tpu.pipeline_mode<synchronous>, transform_indices = @transform_1, window_bounds = array<i64: 32, 64>}, {pipeline_mode = #tpu.pipeline_mode<synchronous>, transform_indices = @transform_2, window_bounds = array<i64: 1, 64>}, {pipeline_mode = #tpu.pipeline_mode<synchronous>, transform_indices = @transform_3, window_bounds = array<i64: 2, 32, 32>}, {pipeline_mode = #tpu.pipeline_mode<synchronous>, transform_indices = @transform_4, window_bounds = array<i64: 1, 64>}, {pipeline_mode = #tpu.pipeline_mode<synchronous>, transform_indices = @transform_5, window_bounds = array<i64: 2, 32, 1>}, {pipeline_mode = #tpu.pipeline_mode<synchronous>, transform_indices = @transform_6, window_bounds = array<i64: 1, 2>}, {transform_indices = @transform_7, window_bounds = array<i64: 8, 2>}]} {
    %c0 = arith.constant 0 : index
    %c0_0 = arith.constant 0 : index
    %0 = vector.load %arg1[%c0, %c0_0] : memref<8x32xf32, #tpu.memory_space<vmem>>, vector<8x32xf32>
    %c0_1 = arith.constant 0 : index
    %c0_2 = arith.constant 0 : index
    %1 = vector.load %arg2[%c0_1, %c0_2] : memref<32x64xf32, #tpu.memory_space<vmem>>, vector<32x64xf32>
    %cst = arith.constant dense<0.000000e+00> : vector<8x64xf32>
    %2 = tpu.matmul %0, %1, %cst {dimension_numbers = #tpu.dot_dimension_numbers<[1], [0], [0], [1], [0, 0, 1, 1], [], []>} : vector<8x32xf32>, vector<32x64xf32>, vector<8x64xf32> -> vector<8x64xf32>
    %c0_3 = arith.constant 0 : index
    %c0_4 = arith.constant 0 : index
    %3 = vector.load %arg3[%c0_3, %c0_4] : memref<1x64xf32, #tpu.memory_space<vmem>>, vector<1x64xf32>
    %4 = vector.broadcast %3 : vector<1x64xf32> to vector<8x64xf32>
    %5 = arith.addf %2, %4 : vector<8x64xf32>
    %cst_5 = arith.constant 0.000000e+00 : f32
    %6 = vector.broadcast %cst_5 : f32 to vector<8x64xf32>
    %7 = arith.maximumf %5, %6 : vector<8x64xf32>
    %8 = vector.extract_strided_slice %7 {offsets = [0, 0], sizes = [8, 32], strides = [1, 1]} : vector<8x64xf32> to vector<8x32xf32>
    %c0_6 = arith.constant 0 : index
    %c0_7 = arith.constant 0 : index
    %c0_8 = arith.constant 0 : index
    %9 = vector.load %arg4[%c0_6, %c0_7, %c0_8] : memref<2x32x32xf32, #tpu.memory_space<vmem>>, vector<1x32x32xf32>
    %10 = vector.shape_cast %9 : vector<1x32x32xf32> to vector<32x32xf32>
    %cst_9 = arith.constant dense<0.000000e+00> : vector<8x32xf32>
    %11 = tpu.matmul %8, %10, %cst_9 {dimension_numbers = #tpu.dot_dimension_numbers<[1], [0], [0], [1], [0, 0, 1, 1], [], []>} : vector<8x32xf32>, vector<32x32xf32>, vector<8x32xf32> -> vector<8x32xf32>
    %12 = vector.extract_strided_slice %7 {offsets = [0, 32], sizes = [8, 32], strides = [1, 1]} : vector<8x64xf32> to vector<8x32xf32>
    %c1 = arith.constant 1 : index
    %c0_10 = arith.constant 0 : index
    %c0_11 = arith.constant 0 : index
    %13 = vector.load %arg4[%c1, %c0_10, %c0_11] : memref<2x32x32xf32, #tpu.memory_space<vmem>>, vector<1x32x32xf32>
    %14 = vector.shape_cast %13 : vector<1x32x32xf32> to vector<32x32xf32>
    %cst_12 = arith.constant dense<0.000000e+00> : vector<8x32xf32>
    %15 = tpu.matmul %12, %14, %cst_12 {dimension_numbers = #tpu.dot_dimension_numbers<[1], [0], [0], [1], [0, 0, 1, 1], [], []>} : vector<8x32xf32>, vector<32x32xf32>, vector<8x32xf32> -> vector<8x32xf32>
    %16 = tpu.concatenate %11, %15 in 1 : vector<8x32xf32>, vector<8x32xf32> -> vector<8x64xf32>
    %c0_13 = arith.constant 0 : index
    %c0_14 = arith.constant 0 : index
    %17 = vector.load %arg5[%c0_13, %c0_14] : memref<1x64xf32, #tpu.memory_space<vmem>>, vector<1x64xf32>
    %18 = vector.broadcast %17 : vector<1x64xf32> to vector<8x64xf32>
    %19 = arith.addf %16, %18 : vector<8x64xf32>
    %cst_15 = arith.constant 0.000000e+00 : f32
    %20 = vector.broadcast %cst_15 : f32 to vector<8x64xf32>
    %21 = arith.maximumf %19, %20 : vector<8x64xf32>
    %22 = vector.extract_strided_slice %21 {offsets = [0, 0], sizes = [8, 32], strides = [1, 1]} : vector<8x64xf32> to vector<8x32xf32>
    %c0_16 = arith.constant 0 : index
    %c0_17 = arith.constant 0 : index
    %c0_18 = arith.constant 0 : index
    %23 = vector.load %arg6[%c0_16, %c0_17, %c0_18] : memref<2x32x1xf32, #tpu.memory_space<vmem>>, vector<1x32x1xf32>
    %24 = vector.shape_cast %23 : vector<1x32x1xf32> to vector<32x1xf32>
    %cst_19 = arith.constant dense<0.000000e+00> : vector<8x1xf32>
    %25 = tpu.matmul %22, %24, %cst_19 {dimension_numbers = #tpu.dot_dimension_numbers<[1], [0], [0], [1], [0, 0, 1, 1], [], []>} : vector<8x32xf32>, vector<32x1xf32>, vector<8x1xf32> -> vector<8x1xf32>
    %26 = vector.extract_strided_slice %21 {offsets = [0, 32], sizes = [8, 32], strides = [1, 1]} : vector<8x64xf32> to vector<8x32xf32>
    %c1_20 = arith.constant 1 : index
    %c0_21 = arith.constant 0 : index
    %c0_22 = arith.constant 0 : index
    %27 = vector.load %arg6[%c1_20, %c0_21, %c0_22] : memref<2x32x1xf32, #tpu.memory_space<vmem>>, vector<1x32x1xf32>
    %28 = vector.shape_cast %27 : vector<1x32x1xf32> to vector<32x1xf32>
    %cst_23 = arith.constant dense<0.000000e+00> : vector<8x1xf32>
    %29 = tpu.matmul %26, %28, %cst_23 {dimension_numbers = #tpu.dot_dimension_numbers<[1], [0], [0], [1], [0, 0, 1, 1], [], []>} : vector<8x32xf32>, vector<32x1xf32>, vector<8x1xf32> -> vector<8x1xf32>
    %30 = tpu.concatenate %25, %29 in 1 : vector<8x1xf32>, vector<8x1xf32> -> vector<8x2xf32>
    %c0_24 = arith.constant 0 : index
    %c0_25 = arith.constant 0 : index
    %31 = vector.load %arg7[%c0_24, %c0_25] : memref<1x2xf32, #tpu.memory_space<vmem>>, vector<1x2xf32>
    %32 = vector.broadcast %31 : vector<1x2xf32> to vector<8x2xf32>
    %33 = arith.addf %30, %32 : vector<8x2xf32>
    %c0_26 = arith.constant 0 : index
    %c0_27 = arith.constant 0 : index
    %34 = vector.load %arg8[%c0_26, %c0_27] : memref<8x2xf32, #tpu.memory_space<vmem>>, vector<8x2xf32>
    tpu.vector_store %arg8[%c0_26, %c0_27], %33 {strides = array<i32>} : memref<8x2xf32, #tpu.memory_space<vmem>>, vector<8x2xf32>,
    return
  }
  func.func @transform_0(%arg0: i32) -> (i32, i32) {
    %c0_i32 = arith.constant 0 : i32
    %c0_i32_0 = arith.constant 0 : i32
    return %arg0, %c0_i32 : i32, i32
  }
  func.func @transform_1(%arg0: i32) -> (i32, i32) {
    %c0_i32 = arith.constant 0 : i32
    %c0_i32_0 = arith.constant 0 : i32
    %c0_i32_1 = arith.constant 0 : i32
    return %c0_i32, %c0_i32_0 : i32, i32
  }
  func.func @transform_2(%arg0: i32) -> (i32, i32) {
    %c0_i32 = arith.constant 0 : i32
    %c0_i32_0 = arith.constant 0 : i32
    %c0_i32_1 = arith.constant 0 : i32
    return %c0_i32, %c0_i32_0 : i32, i32
  }
  func.func @transform_3(%arg0: i32) -> (i32, i32, i32) {
    %c0_i32 = arith.constant 0 : i32
    %c0_i32_0 = arith.constant 0 : i32
    %c0_i32_1 = arith.constant 0 : i32
    %c0_i32_2 = arith.constant 0 : i32
    return %c0_i32, %c0_i32_0, %c0_i32_1 : i32, i32, i32
  }
  func.func @transform_4(%arg0: i32) -> (i32, i32) {
    %c0_i32 = arith.constant 0 : i32
    %c0_i32_0 = arith.constant 0 : i32
    %c0_i32_1 = arith.constant 0 : i32
    return %c0_i32, %c0_i32_0 : i32, i32
  }
  func.func @transform_5(%arg0: i32) -> (i32, i32, i32) {
    %c0_i32 = arith.constant 0 : i32
    %c0_i32_0 = arith.constant 0 : i32
    %c0_i32_1 = arith.constant 0 : i32
    %c0_i32_2 = arith.constant 0 : i32
    return %c0_i32, %c0_i32_0, %c0_i32_1 : i32, i32, i32
  }
  func.func @transform_6(%arg0: i32) -> (i32, i32) {
    %c0_i32 = arith.constant 0 : i32
    %c0_i32_0 = arith.constant 0 : i32
    %c0_i32_1 = arith.constant 0 : i32
    return %c0_i32, %c0_i32_0 : i32, i32
  }
  func.func @transform_7(%arg0: i32) -> (i32, i32) {
    %c0_i32 = arith.constant 0 : i32
    %c0_i32_0 = arith.constant 0 : i32
    return %arg0, %c0_i32 : i32, i32
  }
}

</mosaic_0001>

<llo_original>
// kernel: tpu_custom_call.1
$region0: #{tpu_custom_call.1}
  #allocation0 [shape = 'u32[]', space=smem, size = 0x4, offset = 0x4, fixed_abs, tag = 'smem constant byte address 0x4 - core index']
  #allocation1 [shape = 'u32[144,128]{1,0:T(1,128)}', space=vmem, size = 0x12000, scoped, tag = 'internal scratch']
  %s0 = inlined_call_operand.vmem [shape: f32[8,32], index: 0, kind: input, shape index: {}]
  %s1 = inlined_call_operand.hbm [shape: f32[32,64], index: 1, kind: input, shape index: {}]
  %s2 = inlined_call_operand.vmem [shape: f32[1,64], index: 2, kind: input, shape index: {}]
  %s3 = inlined_call_operand.vmem [shape: f32[2,32,32], index: 3, kind: input, shape index: {}]
  %s4 = inlined_call_operand.vmem [shape: f32[1,64], index: 4, kind: input, shape index: {}]
  %s5 = inlined_call_operand.vmem [shape: f32[2,32,1], index: 5, kind: input, shape index: {}]
  %s6 = inlined_call_operand.vmem [shape: f32[1,2], index: 6, kind: input, shape index: {}]
  %s7 = inlined_call_operand.vmem [shape: f32[8,2], index: 7, kind: output, shape index: {}]
  %s8 = sld [smem:[#allocation0]]
  $region42: #{tpu_custom_call.1} parent=0
    _
  %s10 = ssub.s32 1, %s8
  %s11 = scalar_select 0, %s10, %s8
  $region1: #{tpu_custom_call.1} parent=0
    #allocation2 [shape = 'u8[16384]{0}', space=vmem, size = 0x4000, scoped, tag = 'input window, operand 1, single buffered']
    #allocation3 [shape = 's32[1]{0}', space=sflag, size = 0x4, scoped, tag = 'scoped memory for tpu_custom_call.1']
    %12 = vsyncpa [#allocation3], 0
    // Predicated region
    $region2: #{tpu_custom_call.1} parent=1 // pred_check
      _
    $region3: #{tpu_custom_call.1} parent=1 // pred_check_branch
      %14 = sbr.rel (0) target = $region5
    $region4: #{tpu_custom_call.1} parent=1 // pred_region
      _
    $region5: #{tpu_custom_call.1} parent=1 // pred_fallthru
      _
    // Predicated region
    $region6: #{tpu_custom_call.1} parent=1 // pred_check
      _
    $region7: #{tpu_custom_call.1} parent=1 // pred_check_branch
      %16 = sbr.rel (0) target = $region9
    $region8: #{tpu_custom_call.1} parent=1 // pred_region
      %s18 = ssub.s32 512, 512
      %19 = vsyncadd [#allocation3], %s18
      %s20 = sshll.u32 [#allocation2], 4
      %s21 = int_to_ptr.vmem [resolvable:$true] %s20
      %26 = dma.hbm_to_vmem [thread:$0]  %s1, 512, %s21, [#allocation3], 128, 128, 8
    $region9: #{tpu_custom_call.1} parent=1 // pred_fallthru
      _
    // Predicated region
    $region10: #{tpu_custom_call.1} parent=1 // pred_check
      _
    $region11: #{tpu_custom_call.1} parent=1 // pred_check_branch
      %28 = sbr.rel (0) target = $region13
    $region12: #{tpu_custom_call.1} parent=1 // pred_region
      _
    $region13: #{tpu_custom_call.1} parent=1 // pred_fallthru
      _
    // Predicated region
    $region14: #{tpu_custom_call.1} parent=1 // pred_check
      _
    $region15: #{tpu_custom_call.1} parent=1 // pred_check_branch
      %30 = sbr.rel (0) target = $region17
    $region16: #{tpu_custom_call.1} parent=1 // pred_region
      _
    $region17: #{tpu_custom_call.1} parent=1 // pred_fallthru
      _
    // Predicated region
    $region18: #{tpu_custom_call.1} parent=1 // pred_check
      _
    $region19: #{tpu_custom_call.1} parent=1 // pred_check_branch
      %32 = sbr.rel (0) target = $region21
    $region20: #{tpu_custom_call.1} parent=1 // pred_region
      _
    $region21: #{tpu_custom_call.1} parent=1 // pred_fallthru
      _
    // Predicated region
    $region22: #{tpu_custom_call.1} parent=1 // pred_check
      _
    $region23: #{tpu_custom_call.1} parent=1 // pred_check_branch
      %34 = sbr.rel (0) target = $region25
    $region24: #{tpu_custom_call.1} parent=1 // pred_region
      _
    $region25: #{tpu_custom_call.1} parent=1 // pred_fallthru
      _
    // Predicated region
    $region26: #{tpu_custom_call.1} parent=1 // pred_check
      _
    $region27: #{tpu_custom_call.1} parent=1 // pred_check_branch
      %36 = sbr.rel (0) target = $region29
    $region28: #{tpu_custom_call.1} parent=1 // pred_region
      _
    $region29: #{tpu_custom_call.1} parent=1 // pred_fallthru
      _
    // Predicated region
    $region30: #{tpu_custom_call.1} parent=1 // pred_check
      _
    $region31: #{tpu_custom_call.1} parent=1 // pred_check_branch
      %38 = sbr.rel (0) target = $region33
    $region32: #{tpu_custom_call.1} parent=1 // pred_region
      %39 = dma.done [#allocation3], 512
    $region33: #{tpu_custom_call.1} parent=1 // pred_fallthru
      _
    %v40 = vld [vmem:[%s0] sm:$0xff]
    %v41 = vld [vmem:[#allocation2] sm:$0xff]
    %v42 = vld [vmem:[#allocation2 + $0x8] sm:$0xff]
    %v43 = vld [vmem:[#allocation2 + $0x10] sm:$0xff]
    %v44 = vld [vmem:[#allocation2 + $0x18] sm:$0xff]
    %v45 = vld [vmem:[%s2] sm:$0x1]
    %v47 = vlaneseq
    %v48 = vshrl.u32 %v47, 7
    %v49 = vsub.s32 0, %v48
    %v50 = vrot.slane %v45, %v49
    %vm52 = vcmask 261120
    %v54 = vsel %vm52, %v40, 0
    %56 = vmatprep.subr.mxu0 0.0
    %57 = vmatpush1.msra.mxu0 %v41
    %58 = vmatprep.subr.mxu0 0.0
    %59 = vmatpush1.msra.mxu0 %v42
    %60 = vmatprep.subr.mxu0 0.0
    %61 = vmatpush1.msra.mxu0 %v43
    %62 = vmatprep.subr.mxu0 0.0
    %63 = vmatpush1.msra.mxu0 %v44
    %64 = vmatprep.subr.mxu0 0.0
    %65 = vmatpush1.msra.mxu0 0.0
    %66 = vmatprep.subr.mxu0 0.0
    %67 = vmatpush1.msra.mxu0 0.0
    %68 = vmatprep.subr.mxu0 0.0
    %69 = vmatpush1.msra.mxu0 0.0
    %70 = vmatprep.subr.mxu0 0.0
    %71 = vmatpush1.msra.mxu0 0.0
    %72 = vmatprep.subr.mxu0 0.0
    %73 = vmatpush1.msra.mxu0 0.0
    %74 = vmatprep.subr.mxu0 0.0
    %75 = vmatpush1.msra.mxu0 0.0
    %76 = vmatprep.subr.mxu0 0.0
    %77 = vmatpush1.msra.mxu0 0.0
    %78 = vmatprep.subr.mxu0 0.0
    %79 = vmatpush1.msra.mxu0 0.0
    %80 = vmatprep.subr.mxu0 0.0
    %81 = vmatpush1.msra.mxu0 0.0
    %82 = vmatprep.subr.mxu0 0.0
    %83 = vmatpush1.msra.mxu0 0.0
    %84 = vmatprep.subr.mxu0 0.0
    %85 = vmatpush1.msra.mxu0 0.0
    %86 = vmatprep.subr.mxu0 0.0
    %87 = vmatpush1.msra.mxu0 0.0
    %88 = vmatprep.subr.mxu0 0.0
    %89 = vmatpush1.msra.mxu0 0.0
    %90 = vmatprep.subr.mxu0 0.0
    %91 = vmatpush1.msra.mxu0 0.0
    %92 = vmatprep.subr.mxu0 0.0
    %93 = vmatpush1.msra.mxu0 0.0
    %94 = vmatprep.subr.mxu0 0.0
    %95 = vmatpush1.msra.mxu0 0.0
    %96 = vmatprep.subr.mxu0 0.0
    %97 = vmatpush1.msra.mxu0 0.0
    %98 = vmatprep.subr.mxu0 0.0
    %99 = vmatpush1.msra.mxu0 0.0
    %100 = vmatprep.subr.mxu0 0.0
    %101 = vmatpush1.msra.mxu0 0.0
    %102 = vmatprep.subr.mxu0 0.0
    %103 = vmatpush1.msra.mxu0 0.0
    %104 = vmatprep.subr.mxu0 0.0
    %105 = vmatpush1.msra.mxu0 0.0
    %106 = vmatprep.subr.mxu0 0.0
    %107 = vmatpush1.msra.mxu0 0.0
    %108 = vmatprep.subr.mxu0 0.0
    %109 = vmatpush1.msra.mxu0 0.0
    %110 = vmatprep.subr.mxu0 0.0
    %111 = vmatpush1.msra.mxu0 0.0
    %112 = vmatprep.subr.mxu0 0.0
    %113 = vmatpush1.msra.mxu0 0.0
    %114 = vmatprep.subr.mxu0 0.0
    %115 = vmatpush1.msra.mxu0 0.0
    %116 = vmatprep.subr.mxu0 0.0
    %117 = vmatpush1.msra.mxu0 0.0
    %118 = vmatprep.subr.mxu0 0.0
    %119 = vmatpush1.msra.mxu0 0.0
    %120 = vmatprep.mubr.f32.mxu0 0.0
    %121 = vmatmul.mubr.f32.gmra.mrb[0].mxu0 %v54
    %v122 = vpop.f32.mrb[0].mxu0
    %v123 = vadd.f32 %v50, %v122
    %v124 = vpop.f32.mrb[0].mxu0
    %125 = vdwg.mxu0
    %v126 = vmax.f32 %v123, 0.0
    %v127 = vld [vmem:[%s3] sm:$0xff]
    %v128 = vld [vmem:[%s3 + $0x8] sm:$0xff]
    %v129 = vld [vmem:[%s3 + $0x10] sm:$0xff]
    %v130 = vld [vmem:[%s3 + $0x18] sm:$0xff]
    %v132 = vsel %vm52, %v126, 0
    %134 = vmatprep.subr.mxu0 0.0
    %135 = vmatpush1.msra.mxu0 %v127
    %136 = vmatprep.subr.mxu0 0.0
    %137 = vmatpush1.msra.mxu0 %v128
    %138 = vmatprep.subr.mxu0 0.0
    %139 = vmatpush1.msra.mxu0 %v129
    %140 = vmatprep.subr.mxu0 0.0
    %141 = vmatpush1.msra.mxu0 %v130
    %142 = vmatprep.subr.mxu0 0.0
    %143 = vmatpush1.msra.mxu0 0.0
    %144 = vmatprep.subr.mxu0 0.0
    %145 = vmatpush1.msra.mxu0 0.0
    %146 = vmatprep.subr.mxu0 0.0
    %147 = vmatpush1.msra.mxu0 0.0
    %148 = vmatprep.subr.mxu0 0.0
    %149 = vmatpush1.msra.mxu0 0.0
    %150 = vmatprep.subr.mxu0 0.0
    %151 = vmatpush1.msra.mxu0 0.0
    %152 = vmatprep.subr.mxu0 0.0
    %153 = vmatpush1.msra.mxu0 0.0
    %154 = vmatprep.subr.mxu0 0.0
    %155 = vmatpush1.msra.mxu0 0.0
    %156 = vmatprep.subr.mxu0 0.0
    %157 = vmatpush1.msra.mxu0 0.0
    %158 = vmatprep.subr.mxu0 0.0
    %159 = vmatpush1.msra.mxu0 0.0
    %160 = vmatprep.subr.mxu0 0.0
    %161 = vmatpush1.msra.mxu0 0.0
    %162 = vmatprep.subr.mxu0 0.0
    %163 = vmatpush1.msra.mxu0 0.0
    %164 = vmatprep.subr.mxu0 0.0
    %165 = vmatpush1.msra.mxu0 0.0
    %166 = vmatprep.subr.mxu0 0.0
    %167 = vmatpush1.msra.mxu0 0.0
    %168 = vmatprep.subr.mxu0 0.0
    %169 = vmatpush1.msra.mxu0 0.0
    %170 = vmatprep.subr.mxu0 0.0
    %171 = vmatpush1.msra.mxu0 0.0
    %172 = vmatprep.subr.mxu0 0.0
    %173 = vmatpush1.msra.mxu0 0.0
    %174 = vmatprep.subr.mxu0 0.0
    %175 = vmatpush1.msra.mxu0 0.0
    %176 = vmatprep.subr.mxu0 0.0
    %177 = vmatpush1.msra.mxu0 0.0
    %178 = vmatprep.subr.mxu0 0.0
    %179 = vmatpush1.msra.mxu0 0.0
    %180 = vmatprep.subr.mxu0 0.0
    %181 = vmatpush1.msra.mxu0 0.0
    %182 = vmatprep.subr.mxu0 0.0
    %183 = vmatpush1.msra.mxu0 0.0
    %184 = vmatprep.subr.mxu0 0.0
    %185 = vmatpush1.msra.mxu0 0.0
    %186 = vmatprep.subr.mxu0 0.0
    %187 = vmatpush1.msra.mxu0 0.0
    %188 = vmatprep.subr.mxu0 0.0
    %189 = vmatpush1.msra.mxu0 0.0
    %190 = vmatprep.subr.mxu0 0.0
    %191 = vmatpush1.msra.mxu0 0.0
    %192 = vmatprep.subr.mxu0 0.0
    %193 = vmatpush1.msra.mxu0 0.0
    %194 = vmatprep.subr.mxu0 0.0
    %195 = vmatpush1.msra.mxu0 0.0
    %196 = vmatprep.subr.mxu0 0.0
    %197 = vmatpush1.msra.mxu0 0.0
    %198 = vmatprep.mubr.f32.mxu0 0.0
    %199 = vmatmul.mubr.f32.gmra.mrb[0].mxu0 %v132
    %v200 = vpop.f32.mrb[0].mxu0
    %v201 = vadd.f32 0.0, %v200
    %v202 = vpop.f32.mrb[0].mxu0
    %203 = vdwg.mxu0
    %s204 = scalar_lea.vmem %s3, 32
    %v205 = vld [vmem:[%s204] sm:$0xff]
    %v206 = vld [vmem:[%s204 + $0x8] sm:$0xff]
    %v207 = vld [vmem:[%s204 + $0x10] sm:$0xff]
    %v208 = vld [vmem:[%s204 + $0x18] sm:$0xff]
    %209 = vrot.lane.b32.xlu0 %v126, 96
    %v210 = vpop.permute.xlu0 %209
    %v211 = vsel %vm52, %v210, 0
    %213 = vmatprep.subr.mxu0 0.0
    %214 = vmatpush1.msra.mxu0 %v205
    %215 = vmatprep.subr.mxu0 0.0
    %216 = vmatpush1.msra.mxu0 %v206
    %217 = vmatprep.subr.mxu0 0.0
    %218 = vmatpush1.msra.mxu0 %v207
    %219 = vmatprep.subr.mxu0 0.0
    %220 = vmatpush1.msra.mxu0 %v208
    %221 = vmatprep.subr.mxu0 0.0
    %222 = vmatpush1.msra.mxu0 0.0
    %223 = vmatprep.subr.mxu0 0.0
    %224 = vmatpush1.msra.mxu0 0.0
    %225 = vmatprep.subr.mxu0 0.0
    %226 = vmatpush1.msra.mxu0 0.0
    %227 = vmatprep.subr.mxu0 0.0
    %228 = vmatpush1.msra.mxu0 0.0
    %229 = vmatprep.subr.mxu0 0.0
    %230 = vmatpush1.msra.mxu0 0.0
    %231 = vmatprep.subr.mxu0 0.0
    %232 = vmatpush1.msra.mxu0 0.0
    %233 = vmatprep.subr.mxu0 0.0
    %234 = vmatpush1.msra.mxu0 0.0
    %235 = vmatprep.subr.mxu0 0.0
    %236 = vmatpush1.msra.mxu0 0.0
    %237 = vmatprep.subr.mxu0 0.0
    %238 = vmatpush1.msra.mxu0 0.0
    %239 = vmatprep.subr.mxu0 0.0
    %240 = vmatpush1.msra.mxu0 0.0
    %241 = vmatprep.subr.mxu0 0.0
    %242 = vmatpush1.msra.mxu0 0.0
    %243 = vmatprep.subr.mxu0 0.0
    %244 = vmatpush1.msra.mxu0 0.0
    %245 = vmatprep.subr.mxu0 0.0
    %246 = vmatpush1.msra.mxu0 0.0
    %247 = vmatprep.subr.mxu0 0.0
    %248 = vmatpush1.msra.mxu0 0.0
    %249 = vmatprep.subr.mxu0 0.0
    %250 = vmatpush1.msra.mxu0 0.0
    %251 = vmatprep.subr.mxu0 0.0
    %252 = vmatpush1.msra.mxu0 0.0
    %253 = vmatprep.subr.mxu0 0.0
    %254 = vmatpush1.msra.mxu0 0.0
    %255 = vmatprep.subr.mxu0 0.0
    %256 = vmatpush1.msra.mxu0 0.0
    %257 = vmatprep.subr.mxu0 0.0
    %258 = vmatpush1.msra.mxu0 0.0
    %259 = vmatprep.subr.mxu0 0.0
    %260 = vmatpush1.msra.mxu0 0.0
    %261 = vmatprep.subr.mxu0 0.0
    %262 = vmatpush1.msra.mxu0 0.0
    %263 = vmatprep.subr.mxu0 0.0
    %264 = vmatpush1.msra.mxu0 0.0
    %265 = vmatprep.subr.mxu0 0.0
    %266 = vmatpush1.msra.mxu0 0.0
    %267 = vmatprep.subr.mxu0 0.0
    %268 = vmatpush1.msra.mxu0 0.0
    %269 = vmatprep.subr.mxu0 0.0
    %270 = vmatpush1.msra.mxu0 0.0
    %271 = vmatprep.subr.mxu0 0.0
    %272 = vmatpush1.msra.mxu0 0.0
    %273 = vmatprep.subr.mxu0 0.0
    %274 = vmatpush1.msra.mxu0 0.0
    %275 = vmatprep.subr.mxu0 0.0
    %276 = vmatpush1.msra.mxu0 0.0
    %277 = vmatprep.mubr.f32.mxu0 0.0
    %278 = vmatmul.mubr.f32.gmra.mrb[0].mxu0 %v211
    %v279 = vpop.f32.mrb[0].mxu0
    %v280 = vadd.f32 0.0, %v279
    %v281 = vpop.f32.mrb[0].mxu0
    %282 = vdwg.mxu0
    %284 = vrot.lane.b32.xlu0 %v280, 32
    %v285 = vpop.permute.xlu0 %284
    %v287 = vsel %vm52, %v201, %v285
    %v288 = vld [vmem:[%s4] sm:$0x1]
    %v290 = vlaneseq
    %v291 = vshrl.u32 %v290, 7
    %v292 = vsub.s32 0, %v291
    %v293 = vrot.slane %v288, %v292
    %v295 = vadd.f32 %v287, %v293
    %v296 = vmax.f32 %v295, 0.0
    %v297 = vld [vmem:[%s5] sm:$0xff]
    %v298 = vld [vmem:[%s5 + $0x8] sm:$0xff]
    %v299 = vld [vmem:[%s5 + $0x10] sm:$0xff]
    %v300 = vld [vmem:[%s5 + $0x18] sm:$0xff]
    %v302 = vsel %vm52, %v296, 0
    %304 = vmatprep.subr.mxu0 0.0
    %305 = vmatpush1.msra.mxu0 %v297
    %306 = vmatprep.subr.mxu0 0.0
    %307 = vmatpush1.msra.mxu0 %v298
    %308 = vmatprep.subr.mxu0 0.0
    %309 = vmatpush1.msra.mxu0 %v299
    %310 = vmatprep.subr.mxu0 0.0
    %311 = vmatpush1.msra.mxu0 %v300
    %312 = vmatprep.subr.mxu0 0.0
    %313 = vmatpush1.msra.mxu0 0.0
    %314 = vmatprep.subr.mxu0 0.0
    %315 = vmatpush1.msra.mxu0 0.0
    %316 = vmatprep.subr.mxu0 0.0
    %317 = vmatpush1.msra.mxu0 0.0
    %318 = vmatprep.subr.mxu0 0.0
    %319 = vmatpush1.msra.mxu0 0.0
    %320 = vmatprep.subr.mxu0 0.0
    %321 = vmatpush1.msra.mxu0 0.0
    %322 = vmatprep.subr.mxu0 0.0
    %323 = vmatpush1.msra.mxu0 0.0
    %324 = vmatprep.subr.mxu0 0.0
    %325 = vmatpush1.msra.mxu0 0.0
    %326 = vmatprep.subr.mxu0 0.0
    %327 = vmatpush1.msra.mxu0 0.0
    %328 = vmatprep.subr.mxu0 0.0
    %329 = vmatpush1.msra.mxu0 0.0
    %330 = vmatprep.subr.mxu0 0.0
    %331 = vmatpush1.msra.mxu0 0.0
    %332 = vmatprep.subr.mxu0 0.0
    %333 = vmatpush1.msra.mxu0 0.0
    %334 = vmatprep.subr.mxu0 0.0
    %335 = vmatpush1.msra.mxu0 0.0
    %336 = vmatprep.subr.mxu0 0.0
    %337 = vmatpush1.msra.mxu0 0.0
    %338 = vmatprep.subr.mxu0 0.0
    %339 = vmatpush1.msra.mxu0 0.0
    %340 = vmatprep.subr.mxu0 0.0
    %341 = vmatpush1.msra.mxu0 0.0
    %342 = vmatprep.subr.mxu0 0.0
    %343 = vmatpush1.msra.mxu0 0.0
    %344 = vmatprep.subr.mxu0 0.0
    %345 = vmatpush1.msra.mxu0 0.0
    %346 = vmatprep.subr.mxu0 0.0
    %347 = vmatpush1.msra.mxu0 0.0
    %348 = vmatprep.subr.mxu0 0.0
    %349 = vmatpush1.msra.mxu0 0.0
    %350 = vmatprep.subr.mxu0 0.0
    %351 = vmatpush1.msra.mxu0 0.0
    %352 = vmatprep.subr.mxu0 0.0
    %353 = vmatpush1.msra.mxu0 0.0
    %354 = vmatprep.subr.mxu0 0.0
    %355 = vmatpush1.msra.mxu0 0.0
    %356 = vmatprep.subr.mxu0 0.0
    %357 = vmatpush1.msra.mxu0 0.0
    %358 = vmatprep.subr.mxu0 0.0
    %359 = vmatpush1.msra.mxu0 0.0
    %360 = vmatprep.subr.mxu0 0.0
    %361 = vmatpush1.msra.mxu0 0.0
    %362 = vmatprep.subr.mxu0 0.0
    %363 = vmatpush1.msra.mxu0 0.0
    %364 = vmatprep.subr.mxu0 0.0
    %365 = vmatpush1.msra.mxu0 0.0
    %366 = vmatprep.subr.mxu0 0.0
    %367 = vmatpush1.msra.mxu0 0.0
    %368 = vmatprep.mubr.f32.mxu0 0.0
    %369 = vmatmul.mubr.f32.gmra.mrb[0].mxu0 %v302
    %v370 = vpop.f32.mrb[0].mxu0
    %v371 = vadd.f32 0.0, %v370
    %v372 = vpop.f32.mrb[0].mxu0
    %373 = vdwg.mxu0
    %s374 = scalar_lea.vmem %s5, 32
    %v375 = vld [vmem:[%s374] sm:$0xff]
    %v376 = vld [vmem:[%s374 + $0x8] sm:$0xff]
    %v377 = vld [vmem:[%s374 + $0x10] sm:$0xff]
    %v378 = vld [vmem:[%s374 + $0x18] sm:$0xff]
    %379 = vrot.lane.b32.xlu0 %v296, 96
    %v380 = vpop.permute.xlu0 %379
    %v381 = vsel %vm52, %v380, 0
    %383 = vmatprep.subr.mxu0 0.0
    %384 = vmatpush1.msra.mxu0 %v375
    %385 = vmatprep.subr.mxu0 0.0
    %386 = vmatpush1.msra.mxu0 %v376
    %387 = vmatprep.subr.mxu0 0.0
    %388 = vmatpush1.msra.mxu0 %v377
    %389 = vmatprep.subr.mxu0 0.0
    %390 = vmatpush1.msra.mxu0 %v378
    %391 = vmatprep.subr.mxu0 0.0
    %392 = vmatpush1.msra.mxu0 0.0
    %393 = vmatprep.subr.mxu0 0.0
    %394 = vmatpush1.msra.mxu0 0.0
    %395 = vmatprep.subr.mxu0 0.0
    %396 = vmatpush1.msra.mxu0 0.0
    %397 = vmatprep.subr.mxu0 0.0
    %398 = vmatpush1.msra.mxu0 0.0
    %399 = vmatprep.subr.mxu0 0.0
    %400 = vmatpush1.msra.mxu0 0.0
    %401 = vmatprep.subr.mxu0 0.0
    %402 = vmatpush1.msra.mxu0 0.0
    %403 = vmatprep.subr.mxu0 0.0
    %404 = vmatpush1.msra.mxu0 0.0
    %405 = vmatprep.subr.mxu0 0.0
    %406 = vmatpush1.msra.mxu0 0.0
    %407 = vmatprep.subr.mxu0 0.0
    %408 = vmatpush1.msra.mxu0 0.0
    %409 = vmatprep.subr.mxu0 0.0
    %410 = vmatpush1.msra.mxu0 0.0
    %411 = vmatprep.subr.mxu0 0.0
    %412 = vmatpush1.msra.mxu0 0.0
    %413 = vmatprep.subr.mxu0 0.0
    %414 = vmatpush1.msra.mxu0 0.0
    %415 = vmatprep.subr.mxu0 0.0
    %416 = vmatpush1.msra.mxu0 0.0
    %417 = vmatprep.subr.mxu0 0.0
    %418 = vmatpush1.msra.mxu0 0.0
    %419 = vmatprep.subr.mxu0 0.0
    %420 = vmatpush1.msra.mxu0 0.0
    %421 = vmatprep.subr.mxu0 0.0
    %422 = vmatpush1.msra.mxu0 0.0
    %423 = vmatprep.subr.mxu0 0.0
    %424 = vmatpush1.msra.mxu0 0.0
    %425 = vmatprep.subr.mxu0 0.0
    %426 = vmatpush1.msra.mxu0 0.0
    %427 = vmatprep.subr.mxu0 0.0
    %428 = vmatpush1.msra.mxu0 0.0
    %429 = vmatprep.subr.mxu0 0.0
    %430 = vmatpush1.msra.mxu0 0.0
    %431 = vmatprep.subr.mxu0 0.0
    %432 = vmatpush1.msra.mxu0 0.0
    %433 = vmatprep.subr.mxu0 0.0
    %434 = vmatpush1.msra.mxu0 0.0
    %435 = vmatprep.subr.mxu0 0.0
    %436 = vmatpush1.msra.mxu0 0.0
    %437 = vmatprep.subr.mxu0 0.0
    %438 = vmatpush1.msra.mxu0 0.0
    %439 = vmatprep.subr.mxu0 0.0
    %440 = vmatpush1.msra.mxu0 0.0
    %441 = vmatprep.subr.mxu0 0.0
    %442 = vmatpush1.msra.mxu0 0.0
    %443 = vmatprep.subr.mxu0 0.0
    %444 = vmatpush1.msra.mxu0 0.0
    %445 = vmatprep.subr.mxu0 0.0
    %446 = vmatpush1.msra.mxu0 0.0
    %447 = vmatprep.mubr.f32.mxu0 0.0
    %448 = vmatmul.mubr.f32.gmra.mrb[0].mxu0 %v381
    %v449 = vpop.f32.mrb[0].mxu0
    %v450 = vadd.f32 0.0, %v449
    %v451 = vpop.f32.mrb[0].mxu0
    %452 = vdwg.mxu0
    %454 = vrot.lane.b32.xlu0 %v450, 1
    %v455 = vpop.permute.xlu0 %454
    %vm457 = vcmask 7168
    %v458 = vsel %vm457, %v371, %v455
    %v459 = vld [vmem:[%s6] sm:$0x1]
    %v461 = vlaneseq
    %v462 = vshrl.u32 %v461, 7
    %v463 = vsub.s32 0, %v462
    %v464 = vrot.slane %v459, %v463
    %v466 = vadd.f32 %v458, %v464
    %vm467 = vcmask 15360
    %468 = vst.msk [vmem:[%s7] sm:$0xff] %vm467, %v466
    // Predicated region
    $region34: #{tpu_custom_call.1} parent=1 // pred_check
      _
    $region35: #{tpu_custom_call.1} parent=1 // pred_check_branch
      %470 = sbr.rel (0) target = $region37
    $region36: #{tpu_custom_call.1} parent=1 // pred_region
      _
    $region37: #{tpu_custom_call.1} parent=1 // pred_fallthru
      _
    // Predicated region
    $region38: #{tpu_custom_call.1} parent=1 // pred_check
      _
    $region39: #{tpu_custom_call.1} parent=1 // pred_check_branch
      %472 = sbr.rel (0) target = $region41
    $region40: #{tpu_custom_call.1} parent=1 // pred_region
      _
    $region41: #{tpu_custom_call.1} parent=1 // pred_fallthru
      _
    %473 = vsyncpa [#allocation3], 1

// kernel: tpu_custom_call.1
$region0: #{tpu_custom_call.1}
  #allocation0 [shape = 'u32[]', space=smem, size = 0x4, offset = 0x4, fixed_abs, tag = 'smem constant byte address 0x4 - core index']
  #allocation1 [shape = 'u32[144,128]{1,0:T(1,128)}', space=vmem, size = 0x12000, scoped, tag = 'internal scratch']
  %s0 = inlined_call_operand.vmem [shape: f32[8,32], index: 0, kind: input, shape index: {}]
  %s1 = inlined_call_operand.hbm [shape: f32[32,64], index: 1, kind: input, shape index: {}]
  %s2 = inlined_call_operand.vmem [shape: f32[1,64], index: 2, kind: input, shape index: {}]
  %s3 = inlined_call_operand.vmem [shape: f32[2,32,32], index: 3, kind: input, shape index: {}]
  %s4 = inlined_call_operand.vmem [shape: f32[1,64], index: 4, kind: input, shape index: {}]
  %s5 = inlined_call_operand.vmem [shape: f32[2,32,1], index: 5, kind: input, shape index: {}]
  %s6 = inlined_call_operand.vmem [shape: f32[1,2], index: 6, kind: input, shape index: {}]
  %s7 = inlined_call_operand.vmem [shape: f32[8,2], index: 7, kind: output, shape index: {}]
  %s8 = sld [smem:[#allocation0]]
  $region42: #{tpu_custom_call.1} parent=0
    _
  %s10 = ssub.s32 1, %s8
  %s11 = scalar_select 0, %s10, %s8
  $region1: #{tpu_custom_call.1} parent=0
    #allocation2 [shape = 'u8[16384]{0}', space=vmem, size = 0x4000, scoped, tag = 'input window, operand 1, single buffered']
    #allocation3 [shape = 's32[1]{0}', space=sflag, size = 0x4, scoped, tag = 'scoped memory for tpu_custom_call.1']
    %12 = vsyncpa [#allocation3], 0
    // Predicated region
    $region2: #{tpu_custom_call.1} parent=1 // pred_check
      _
    $region3: #{tpu_custom_call.1} parent=1 // pred_check_branch
      %14 = sbr.rel (0) target = $region5
    $region4: #{tpu_custom_call.1} parent=1 // pred_region
      _
    $region5: #{tpu_custom_call.1} parent=1 // pred_fallthru
      _
    // Predicated region
    $region6: #{tpu_custom_call.1} parent=1 // pred_check
      _
    $region7: #{tpu_custom_call.1} parent=1 // pred_check_branch
      %16 = sbr.rel (0) target = $region9
    $region8: #{tpu_custom_call.1} parent=1 // pred_region
      %s18 = ssub.s32 512, 512
      %19 = vsyncadd [#allocation3], %s18
      %s20 = sshll.u32 [#allocation2], 4
      %s21 = int_to_ptr.vmem [resolvable:$true] %s20
      %26 = dma.hbm_to_vmem [thread:$0]  %s1, 512, %s21, [#allocation3], 128, 128, 8
    $region9: #{tpu_custom_call.1} parent=1 // pred_fallthru
      _
    // Predicated region
    $region10: #{tpu_custom_call.1} parent=1 // pred_check
      _
    $region11: #{tpu_custom_call.1} parent=1 // pred_check_branch
      %28 = sbr.rel (0) target = $region13
    $region12: #{tpu_custom_call.1} parent=1 // pred_region
      _
    $region13: #{tpu_custom_call.1} parent=1 // pred_fallthru
      _
    // Predicated region
    $region14: #{tpu_custom_call.1} parent=1 // pred_check
      _
    $region15: #{tpu_custom_call.1} parent=1 // pred_check_branch
      %30 = sbr.rel (0) target = $region17
    $region16: #{tpu_custom_call.1} parent=1 // pred_region
      _
    $region17: #{tpu_custom_call.1} parent=1 // pred_fallthru
      _
    // Predicated region
    $region18: #{tpu_custom_call.1} parent=1 // pred_check
      _
    $region19: #{tpu_custom_call.1} parent=1 // pred_check_branch
      %32 = sbr.rel (0) target = $region21
    $region20: #{tpu_custom_call.1} parent=1 // pred_region
      _
    $region21: #{tpu_custom_call.1} parent=1 // pred_fallthru
      _
    // Predicated region
    $region22: #{tpu_custom_call.1} parent=1 // pred_check
      _
    $region23: #{tpu_custom_call.1} parent=1 // pred_check_branch
      %34 = sbr.rel (0) target = $region25
    $region24: #{tpu_custom_call.1} parent=1 // pred_region
      _
    $region25: #{tpu_custom_call.1} parent=1 // pred_fallthru
      _
    // Predicated region
    $region26: #{tpu_custom_call.1} parent=1 // pred_check
      _
    $region27: #{tpu_custom_call.1} parent=1 // pred_check_branch
      %36 = sbr.rel (0) target = $region29
    $region28: #{tpu_custom_call.1} parent=1 // pred_region
      _
    $region29: #{tpu_custom_call.1} parent=1 // pred_fallthru
      _
    // Predicated region
    $region30: #{tpu_custom_call.1} parent=1 // pred_check
      _
    $region31: #{tpu_custom_call.1} parent=1 // pred_check_branch
      %38 = sbr.rel (0) target = $region33
    $region32: #{tpu_custom_call.1} parent=1 // pred_region
      %39 = dma.done [#allocation3], 512
    $region33: #{tpu_custom_call.1} parent=1 // pred_fallthru
      _
    %v40 = vld [vmem:[%s0] sm:$0xff]
    %v41 = vld [vmem:[#allocation2] sm:$0xff]
    %v42 = vld [vmem:[#allocation2 + $0x8] sm:$0xff]
    %v43 = vld [vmem:[#allocation2 + $0x10] sm:$0xff]
    %v44 = vld [vmem:[#allocation2 + $0x18] sm:$0xff]
    %v45 = vld [vmem:[%s2] sm:$0x1]
    %v47 = vlaneseq
    %v48 = vshrl.u32 %v47, 7
    %v49 = vsub.s32 0, %v48
    %v50 = vrot.slane %v45, %v49
    %vm52 = vcmask 261120
    %v54 = vsel %vm52, %v40, 0
    %56 = vmatprep.subr.mxu0 0.0
    %57 = vmatpush1.msra.mxu0 %v41
    %58 = vmatprep.subr.mxu0 0.0
    %59 = vmatpush1.msra.mxu0 %v42
    %60 = vmatprep.subr.mxu0 0.0
    %61 = vmatpush1.msra.mxu0 %v43
    %62 = vmatprep.subr.mxu0 0.0
    %63 = vmatpush1.msra.mxu0 %v44
    %64 = vmatprep.subr.mxu0 0.0
    %65 = vmatpush1.msra.mxu0 0.0
    %66 = vmatprep.subr.mxu0 0.0
    %67 = vmatpush1.msra.mxu0 0.0
    %68 = vmatprep.subr.mxu0 0.0
    %69 = vmatpush1.msra.mxu0 0.0
    %70 = vmatprep.subr.mxu0 0.0
    %71 = vmatpush1.msra.mxu0 0.0
    %72 = vmatprep.subr.mxu0 0.0
    %73 = vmatpush1.msra.mxu0 0.0
    %74 = vmatprep.subr.mxu0 0.0
    %75 = vmatpush1.msra.mxu0 0.0
    %76 = vmatprep.subr.mxu0 0.0
    %77 = vmatpush1.msra.mxu0 0.0
    %78 = vmatprep.subr.mxu0 0.0
    %79 = vmatpush1.msra.mxu0 0.0
    %80 = vmatprep.subr.mxu0 0.0
    %81 = vmatpush1.msra.mxu0 0.0
    %82 = vmatprep.subr.mxu0 0.0
    %83 = vmatpush1.msra.mxu0 0.0
    %84 = vmatprep.subr.mxu0 0.0
    %85 = vmatpush1.msra.mxu0 0.0
    %86 = vmatprep.subr.mxu0 0.0
    %87 = vmatpush1.msra.mxu0 0.0
    %88 = vmatprep.subr.mxu0 0.0
    %89 = vmatpush1.msra.mxu0 0.0
    %90 = vmatprep.subr.mxu0 0.0
    %91 = vmatpush1.msra.mxu0 0.0
    %92 = vmatprep.subr.mxu0 0.0
    %93 = vmatpush1.msra.mxu0 0.0
    %94 = vmatprep.subr.mxu0 0.0
    %95 = vmatpush1.msra.mxu0 0.0
    %96 = vmatprep.subr.mxu0 0.0
    %97 = vmatpush1.msra.mxu0 0.0
    %98 = vmatprep.subr.mxu0 0.0
    %99 = vmatpush1.msra.mxu0 0.0
    %100 = vmatprep.subr.mxu0 0.0
    %101 = vmatpush1.msra.mxu0 0.0
    %102 = vmatprep.subr.mxu0 0.0
    %103 = vmatpush1.msra.mxu0 0.0
    %104 = vmatprep.subr.mxu0 0.0
    %105 = vmatpush1.msra.mxu0 0.0
    %106 = vmatprep.subr.mxu0 0.0
    %107 = vmatpush1.msra.mxu0 0.0
    %108 = vmatprep.subr.mxu0 0.0
    %109 = vmatpush1.msra.mxu0 0.0
    %110 = vmatprep.subr.mxu0 0.0
    %111 = vmatpush1.msra.mxu0 0.0
    %112 = vmatprep.subr.mxu0 0.0
    %113 = vmatpush1.msra.mxu0 0.0
    %114 = vmatprep.subr.mxu0 0.0
    %115 = vmatpush1.msra.mxu0 0.0
    %116 = vmatprep.subr.mxu0 0.0
    %117 = vmatpush1.msra.mxu0 0.0
    %118 = vmatprep.subr.mxu0 0.0
    %119 = vmatpush1.msra.mxu0 0.0
    %120 = vmatprep.mubr.f32.mxu0 0.0
    %121 = vmatmul.mubr.f32.gmra.mrb[0].mxu0 %v54
    %v122 = vpop.f32.mrb[0].mxu0
    %v123 = vadd.f32 %v50, %v122
    %v124 = vpop.f32.mrb[0].mxu0
    %125 = vdwg.mxu0
    %v126 = vmax.f32 %v123, 0.0
    %v127 = vld [vmem:[%s3] sm:$0xff]
    %v128 = vld [vmem:[%s3 + $0x8] sm:$0xff]
    %v129 = vld [vmem:[%s3 + $0x10] sm:$0xff]
    %v130 = vld [vmem:[%s3 + $0x18] sm:$0xff]
    %v132 = vsel %vm52, %v126, 0
    %134 = vmatprep.subr.mxu0 0.0
    %135 = vmatpush1.msra.mxu0 %v127
    %136 = vmatprep.subr.mxu0 0.0
    %137 = vmatpush1.msra.mxu0 %v128
    %138 = vmatprep.subr.mxu0 0.0
    %139 = vmatpush1.msra.mxu0 %v129
    %140 = vmatprep.subr.mxu0 0.0
    %141 = vmatpush1.msra.mxu0 %v130
    %142 = vmatprep.subr.mxu0 0.0
    %143 = vmatpush1.msra.mxu0 0.0
    %144 = vmatprep.subr.mxu0 0.0
    %145 = vmatpush1.msra.mxu0 0.0
    %146 = vmatprep.subr.mxu0 0.0
    %147 = vmatpush1.msra.mxu0 0.0
    %148 = vmatprep.subr.mxu0 0.0
    %149 = vmatpush1.msra.mxu0 0.0
    %150 = vmatprep.subr.mxu0 0.0
    %151 = vmatpush1.msra.mxu0 0.0
    %152 = vmatprep.subr.mxu0 0.0
    %153 = vmatpush1.msra.mxu0 0.0
    %154 = vmatprep.subr.mxu0 0.0
    %155 = vmatpush1.msra.mxu0 0.0
    %156 = vmatprep.subr.mxu0 0.0
    %157 = vmatpush1.msra.mxu0 0.0
    %158 = vmatprep.subr.mxu0 0.0
    %159 = vmatpush1.msra.mxu0 0.0
    %160 = vmatprep.subr.mxu0 0.0
    %161 = vmatpush1.msra.mxu0 0.0
    %162 = vmatprep.subr.mxu0 0.0
    %163 = vmatpush1.msra.mxu0 0.0
    %164 = vmatprep.subr.mxu0 0.0
    %165 = vmatpush1.msra.mxu0 0.0
    %166 = vmatprep.subr.mxu0 0.0
    %167 = vmatpush1.msra.mxu0 0.0
    %168 = vmatprep.subr.mxu0 0.0
    %169 = vmatpush1.msra.mxu0 0.0
    %170 = vmatprep.subr.mxu0 0.0
    %171 = vmatpush1.msra.mxu0 0.0
    %172 = vmatprep.subr.mxu0 0.0
    %173 = vmatpush1.msra.mxu0 0.0
    %174 = vmatprep.subr.mxu0 0.0
    %175 = vmatpush1.msra.mxu0 0.0
    %176 = vmatprep.subr.mxu0 0.0
    %177 = vmatpush1.msra.mxu0 0.0
    %178 = vmatprep.subr.mxu0 0.0
    %179 = vmatpush1.msra.mxu0 0.0
    %180 = vmatprep.subr.mxu0 0.0
    %181 = vmatpush1.msra.mxu0 0.0
    %182 = vmatprep.subr.mxu0 0.0
    %183 = vmatpush1.msra.mxu0 0.0
    %184 = vmatprep.subr.mxu0 0.0
    %185 = vmatpush1.msra.mxu0 0.0
    %186 = vmatprep.subr.mxu0 0.0
    %187 = vmatpush1.msra.mxu0 0.0
    %188 = vmatprep.subr.mxu0 0.0
    %189 = vmatpush1.msra.mxu0 0.0
    %190 = vmatprep.subr.mxu0 0.0
    %191 = vmatpush1.msra.mxu0 0.0
    %192 = vmatprep.subr.mxu0 0.0
    %193 = vmatpush1.msra.mxu0 0.0
    %194 = vmatprep.subr.mxu0 0.0
    %195 = vmatpush1.msra.mxu0 0.0
    %196 = vmatprep.subr.mxu0 0.0
    %197 = vmatpush1.msra.mxu0 0.0
    %198 = vmatprep.mubr.f32.mxu0 0.0
    %199 = vmatmul.mubr.f32.gmra.mrb[0].mxu0 %v132
    %v200 = vpop.f32.mrb[0].mxu0
    %v201 = vadd.f32 0.0, %v200
    %v202 = vpop.f32.mrb[0].mxu0
    %203 = vdwg.mxu0
    %s204 = scalar_lea.vmem %s3, 32
    %v205 = vld [vmem:[%s204] sm:$0xff]
    %v206 = vld [vmem:[%s204 + $0x8] sm:$0xff]
    %v207 = vld [vmem:[%s204 + $0x10] sm:$0xff]
    %v208 = vld [vmem:[%s204 + $0x18] sm:$0xff]
    %209 = vrot.lane.b32.xlu0 %v126, 96
    %v210 = vpop.permute.xlu0 %209
    %v211 = vsel %vm52, %v210, 0
    %213 = vmatprep.subr.mxu0 0.0
    %214 = vmatpush1.msra.mxu0 %v205
    %215 = vmatprep.subr.mxu0 0.0
    %216 = vmatpush1.msra.mxu0 %v206
    %217 = vmatprep.subr.mxu0 0.0
    %218 = vmatpush1.msra.mxu0 %v207
    %219 = vmatprep.subr.mxu0 0.0
    %220 = vmatpush1.msra.mxu0 %v208
    %221 = vmatprep.subr.mxu0 0.0
    %222 = vmatpush1.msra.mxu0 0.0
    %223 = vmatprep.subr.mxu0 0.0
    %224 = vmatpush1.msra.mxu0 0.0
    %225 = vmatprep.subr.mxu0 0.0
    %226 = vmatpush1.msra.mxu0 0.0
    %227 = vmatprep.subr.mxu0 0.0
    %228 = vmatpush1.msra.mxu0 0.0
    %229 = vmatprep.subr.mxu0 0.0
    %230 = vmatpush1.msra.mxu0 0.0
    %231 = vmatprep.subr.mxu0 0.0
    %232 = vmatpush1.msra.mxu0 0.0
    %233 = vmatprep.subr.mxu0 0.0
    %234 = vmatpush1.msra.mxu0 0.0
    %235 = vmatprep.subr.mxu0 0.0
    %236 = vmatpush1.msra.mxu0 0.0
    %237 = vmatprep.subr.mxu0 0.0
    %238 = vmatpush1.msra.mxu0 0.0
    %239 = vmatprep.subr.mxu0 0.0
    %240 = vmatpush1.msra.mxu0 0.0
    %241 = vmatprep.subr.mxu0 0.0
    %242 = vmatpush1.msra.mxu0 0.0
    %243 = vmatprep.subr.mxu0 0.0
    %244 = vmatpush1.msra.mxu0 0.0
    %245 = vmatprep.subr.mxu0 0.0
    %246 = vmatpush1.msra.mxu0 0.0
    %247 = vmatprep.subr.mxu0 0.0
    %248 = vmatpush1.msra.mxu0 0.0
    %249 = vmatprep.subr.mxu0 0.0
    %250 = vmatpush1.msra.mxu0 0.0
    %251 = vmatprep.subr.mxu0 0.0
    %252 = vmatpush1.msra.mxu0 0.0
    %253 = vmatprep.subr.mxu0 0.0
    %254 = vmatpush1.msra.mxu0 0.0
    %255 = vmatprep.subr.mxu0 0.0
    %256 = vmatpush1.msra.mxu0 0.0
    %257 = vmatprep.subr.mxu0 0.0
    %258 = vmatpush1.msra.mxu0 0.0
    %259 = vmatprep.subr.mxu0 0.0
    %260 = vmatpush1.msra.mxu0 0.0
    %261 = vmatprep.subr.mxu0 0.0
    %262 = vmatpush1.msra.mxu0 0.0
    %263 = vmatprep.subr.mxu0 0.0
    %264 = vmatpush1.msra.mxu0 0.0
    %265 = vmatprep.subr.mxu0 0.0
    %266 = vmatpush1.msra.mxu0 0.0
    %267 = vmatprep.subr.mxu0 0.0
    %268 = vmatpush1.msra.mxu0 0.0
    %269 = vmatprep.subr.mxu0 0.0
    %270 = vmatpush1.msra.mxu0 0.0
    %271 = vmatprep.subr.mxu0 0.0
    %272 = vmatpush1.msra.mxu0 0.0
    %273 = vmatprep.subr.mxu0 0.0
    %274 = vmatpush1.msra.mxu0 0.0
    %275 = vmatprep.subr.mxu0 0.0
    %276 = vmatpush1.msra.mxu0 0.0
    %277 = vmatprep.mubr.f32.mxu0 0.0
    %278 = vmatmul.mubr.f32.gmra.mrb[0].mxu0 %v211
    %v279 = vpop.f32.mrb[0].mxu0
    %v280 = vadd.f32 0.0, %v279
    %v281 = vpop.f32.mrb[0].mxu0
    %282 = vdwg.mxu0
    %284 = vrot.lane.b32.xlu0 %v280, 32
    %v285 = vpop.permute.xlu0 %284
    %v287 = vsel %vm52, %v201, %v285
    %v288 = vld [vmem:[%s4] sm:$0x1]
    %v290 = vlaneseq
    %v291 = vshrl.u32 %v290, 7
    %v292 = vsub.s32 0, %v291
    %v293 = vrot.slane %v288, %v292
    %v295 = vadd.f32 %v287, %v293
    %v296 = vmax.f32 %v295, 0.0
    %v297 = vld [vmem:[%s5] sm:$0xff]
    %v298 = vld [vmem:[%s5 + $0x8] sm:$0xff]
    %v299 = vld [vmem:[%s5 + $0x10] sm:$0xff]
    %v300 = vld [vmem:[%s5 + $0x18] sm:$0xff]
    %v302 = vsel %vm52, %v296, 0
    %304 = vmatprep.subr.mxu0 0.0
    %305 = vmatpush1.msra.mxu0 %v297
    %306 = vmatprep.subr.mxu0 0.0
    %307 = vmatpush1.msra.mxu0 %v298
    %308 = vmatprep.subr.mxu0 0.0
    %309 = vmatpush1.msra.mxu0 %v299
    %310 = vmatprep.subr.mxu0 0.0
    %311 = vmatpush1.msra.mxu0 %v300
    %312 = vmatprep.subr.mxu0 0.0
    %313 = vmatpush1.msra.mxu0 0.0
    %314 = vmatprep.subr.mxu0 0.0
    %315 = vmatpush1.msra.mxu0 0.0
    %316 = vmatprep.subr.mxu0 0.0
    %317 = vmatpush1.msra.mxu0 0.0
    %318 = vmatprep.subr.mxu0 0.0
    %319 = vmatpush1.msra.mxu0 0.0
    %320 = vmatprep.subr.mxu0 0.0
    %321 = vmatpush1.msra.mxu0 0.0
    %322 = vmatprep.subr.mxu0 0.0
    %323 = vmatpush1.msra.mxu0 0.0
    %324 = vmatprep.subr.mxu0 0.0
    %325 = vmatpush1.msra.mxu0 0.0
    %326 = vmatprep.subr.mxu0 0.0
    %327 = vmatpush1.msra.mxu0 0.0
    %328 = vmatprep.subr.mxu0 0.0
    %329 = vmatpush1.msra.mxu0 0.0
    %330 = vmatprep.subr.mxu0 0.0
    %331 = vmatpush1.msra.mxu0 0.0
    %332 = vmatprep.subr.mxu0 0.0
    %333 = vmatpush1.msra.mxu0 0.0
    %334 = vmatprep.subr.mxu0 0.0
    %335 = vmatpush1.msra.mxu0 0.0
    %336 = vmatprep.subr.mxu0 0.0
    %337 = vmatpush1.msra.mxu0 0.0
    %338 = vmatprep.subr.mxu0 0.0
    %339 = vmatpush1.msra.mxu0 0.0
    %340 = vmatprep.subr.mxu0 0.0
    %341 = vmatpush1.msra.mxu0 0.0
    %342 = vmatprep.subr.mxu0 0.0
    %343 = vmatpush1.msra.mxu0 0.0
    %344 = vmatprep.subr.mxu0 0.0
    %345 = vmatpush1.msra.mxu0 0.0
    %346 = vmatprep.subr.mxu0 0.0
    %347 = vmatpush1.msra.mxu0 0.0
    %348 = vmatprep.subr.mxu0 0.0
    %349 = vmatpush1.msra.mxu0 0.0
    %350 = vmatprep.subr.mxu0 0.0
    %351 = vmatpush1.msra.mxu0 0.0
    %352 = vmatprep.subr.mxu0 0.0
    %353 = vmatpush1.msra.mxu0 0.0
    %354 = vmatprep.subr.mxu0 0.0
    %355 = vmatpush1.msra.mxu0 0.0
    %356 = vmatprep.subr.mxu0 0.0
    %357 = vmatpush1.msra.mxu0 0.0
    %358 = vmatprep.subr.mxu0 0.0
    %359 = vmatpush1.msra.mxu0 0.0
    %360 = vmatprep.subr.mxu0 0.0
    %361 = vmatpush1.msra.mxu0 0.0
    %362 = vmatprep.subr.mxu0 0.0
    %363 = vmatpush1.msra.mxu0 0.0
    %364 = vmatprep.subr.mxu0 0.0
    %365 = vmatpush1.msra.mxu0 0.0
    %366 = vmatprep.subr.mxu0 0.0
    %367 = vmatpush1.msra.mxu0 0.0
    %368 = vmatprep.mubr.f32.mxu0 0.0
    %369 = vmatmul.mubr.f32.gmra.mrb[0].mxu0 %v302
    %v370 = vpop.f32.mrb[0].mxu0
    %v371 = vadd.f32 0.0, %v370
    %v372 = vpop.f32.mrb[0].mxu0
    %373 = vdwg.mxu0
    %s374 = scalar_lea.vmem %s5, 32
    %v375 = vld [vmem:[%s374] sm:$0xff]
    %v376 = vld [vmem:[%s374 + $0x8] sm:$0xff]
    %v377 = vld [vmem:[%s374 + $0x10] sm:$0xff]
    %v378 = vld [vmem:[%s374 + $0x18] sm:$0xff]
    %379 = vrot.lane.b32.xlu0 %v296, 96
    %v380 = vpop.permute.xlu0 %379
    %v381 = vsel %vm52, %v380, 0
    %383 = vmatprep.subr.mxu0 0.0
    %384 = vmatpush1.msra.mxu0 %v375
    %385 = vmatprep.subr.mxu0 0.0
    %386 = vmatpush1.msra.mxu0 %v376
    %387 = vmatprep.subr.mxu0 0.0
    %388 = vmatpush1.msra.mxu0 %v377
    %389 = vmatprep.subr.mxu0 0.0
    %390 = vmatpush1.msra.mxu0 %v378
    %391 = vmatprep.subr.mxu0 0.0
    %392 = vmatpush1.msra.mxu0 0.0
    %393 = vmatprep.subr.mxu0 0.0
    %394 = vmatpush1.msra.mxu0 0.0
    %395 = vmatprep.subr.mxu0 0.0
    %396 = vmatpush1.msra.mxu0 0.0
    %397 = vmatprep.subr.mxu0 0.0
    %398 = vmatpush1.msra.mxu0 0.0
    %399 = vmatprep.subr.mxu0 0.0
    %400 = vmatpush1.msra.mxu0 0.0
    %401 = vmatprep.subr.mxu0 0.0
    %402 = vmatpush1.msra.mxu0 0.0
    %403 = vmatprep.subr.mxu0 0.0
    %404 = vmatpush1.msra.mxu0 0.0
    %405 = vmatprep.subr.mxu0 0.0
    %406 = vmatpush1.msra.mxu0 0.0
    %407 = vmatprep.subr.mxu0 0.0
    %408 = vmatpush1.msra.mxu0 0.0
    %409 = vmatprep.subr.mxu0 0.0
    %410 = vmatpush1.msra.mxu0 0.0
    %411 = vmatprep.subr.mxu0 0.0
    %412 = vmatpush1.msra.mxu0 0.0
    %413 = vmatprep.subr.mxu0 0.0
    %414 = vmatpush1.msra.mxu0 0.0
    %415 = vmatprep.subr.mxu0 0.0
    %416 = vmatpush1.msra.mxu0 0.0
    %417 = vmatprep.subr.mxu0 0.0
    %418 = vmatpush1.msra.mxu0 0.0
    %419 = vmatprep.subr.mxu0 0.0
    %420 = vmatpush1.msra.mxu0 0.0
    %421 = vmatprep.subr.mxu0 0.0
    %422 = vmatpush1.msra.mxu0 0.0
    %423 = vmatprep.subr.mxu0 0.0
    %424 = vmatpush1.msra.mxu0 0.0
    %425 = vmatprep.subr.mxu0 0.0
    %426 = vmatpush1.msra.mxu0 0.0
    %427 = vmatprep.subr.mxu0 0.0
    %428 = vmatpush1.msra.mxu0 0.0
    %429 = vmatprep.subr.mxu0 0.0
    %430 = vmatpush1.msra.mxu0 0.0
    %431 = vmatprep.subr.mxu0 0.0
    %432 = vmatpush1.msra.mxu0 0.0
    %433 = vmatprep.subr.mxu0 0.0
    %434 = vmatpush1.msra.mxu0 0.0
    %435 = vmatprep.subr.mxu0 0.0
    %436 = vmatpush1.msra.mxu0 0.0
    %437 = vmatprep.subr.mxu0 0.0
    %438 = vmatpush1.msra.mxu0 0.0
    %439 = vmatprep.subr.mxu0 0.0
    %440 = vmatpush1.msra.mxu0 0.0
    %441 = vmatprep.subr.mxu0 0.0
    %442 = vmatpush1.msra.mxu0 0.0
    %443 = vmatprep.subr.mxu0 0.0
    %444 = vmatpush1.msra.mxu0 0.0
    %445 = vmatprep.subr.mxu0 0.0
    %446 = vmatpush1.msra.mxu0 0.0
    %447 = vmatprep.mubr.f32.mxu0 0.0
    %448 = vmatmul.mubr.f32.gmra.mrb[0].mxu0 %v381
    %v449 = vpop.f32.mrb[0].mxu0
    %v450 = vadd.f32 0.0, %v449
    %v451 = vpop.f32.mrb[0].mxu0
    %452 = vdwg.mxu0
    %454 = vrot.lane.b32.xlu0 %v450, 1
    %v455 = vpop.permute.xlu0 %454
    %vm457 = vcmask 7168
    %v458 = vsel %vm457, %v371, %v455
    %v459 = vld [vmem:[%s6] sm:$0x1]
    %v461 = vlaneseq
    %v462 = vshrl.u32 %v461, 7
    %v463 = vsub.s32 0, %v462
    %v464 = vrot.slane %v459, %v463
    %v466 = vadd.f32 %v458, %v464
    %vm467 = vcmask 15360
    %468 = vst.msk [vmem:[%s7] sm:$0xff] %vm467, %v466
    // Predicated region
    $region34: #{tpu_custom_call.1} parent=1 // pred_check
      _
    $region35: #{tpu_custom_call.1} parent=1 // pred_check_branch
      %470 = sbr.rel (0) target = $region37
    $region36: #{tpu_custom_call.1} parent=1 // pred_region
      _
    $region37: #{tpu_custom_call.1} parent=1 // pred_fallthru
      _
    // Predicated region
    $region38: #{tpu_custom_call.1} parent=1 // pred_check
      _
    $region39: #{tpu_custom_call.1} parent=1 // pred_check_branch
      %472 = sbr.rel (0) target = $region41
    $region40: #{tpu_custom_call.1} parent=1 // pred_region
      _
    $region41: #{tpu_custom_call.1} parent=1 // pred_fallthru
      _
    %473 = vsyncpa [#allocation3], 1

</llo_original>
